<compile_context>
chip_gen: v7x
topology: tpu7x:2x2x1
jax: 0.10.0
libtpu: 0.0.40
codegen_flags: <defaults>
</compile_context>

<pallas_src>
import functools

import numpy as np
import jax
import jax.numpy as jnp
from jax.experimental import pallas as pl
from jax.experimental.pallas import tpu as pltpu

FEAT_STRIDE = 16
POOL = 7
C_FEAT = 128         # stand-in for resnet18's 512 feature channels (lane-dense: mult of 128)
FC_HIDDEN = 256      # stand-in for the 4096-wide fc6/fc7
N_ANCHORS = 9        # 3 scales * 3 ratios
N_PROPOSALS = 8      # rois kept by the (simplified) proposal layer
RPN_HEAD_N = 128     # lane-padded width of fused RPN 1x1 head: [fg(9) | bbox(36) | 0]
HEAD_N = 128         # lane-padded width of fused cls/bbox head: [cls | bbox | 0]
# Per-kernel working sets here are <= ~8 MiB; 16 MiB leaves double-buffer headroom and is
# far under every generation's ceiling (v5e/v6e 128 MiB, v7x 64 MiB).
VMEM_LIMIT = 16 * 1024 * 1024


def _mosaic_params(*dims):
    return pltpu.CompilerParams(dimension_semantics=tuple(dims),
                                vmem_limit_bytes=VMEM_LIMIT)


# ----------------------------- linear / matmul kernels -----------------------------

def _linear_fused_kernel(x_ref, w_ref, b_ref, o_ref, *, relu):
    # Single-K-step path: whole reduction in one dot, no scratch accumulator.
    y = jnp.dot(x_ref[...], w_ref[...], preferred_element_type=jnp.float32) + b_ref[...]
    if relu:
        y = jnp.maximum(y, 0.0)
    o_ref[...] = y.astype(o_ref.dtype)


def _linear_kernel(x_ref, w_ref, b_ref, o_ref, acc_ref, *, relu):
    # General K-tiled path (only needed at real sizes; unused for the stand-in shapes).
    @pl.when(pl.program_id(2) == 0)
    def _():
        acc_ref[...] = jnp.zeros_like(acc_ref)

    acc_ref[...] += jnp.dot(x_ref[...], w_ref[...], preferred_element_type=jnp.float32)

    @pl.when(pl.program_id(2) == pl.num_programs(2) - 1)
    def _():
        y = acc_ref[...] + b_ref[...]
        if relu:
            y = jnp.maximum(y, 0.0)
        o_ref[...] = y.astype(o_ref.dtype)


def linear_tiled(x, w, b, *, relu=False, out_dtype=jnp.float32, tm=128, tn=128, tk=None):
    """Tiled matmul + bias (+ReLU): bf16 streams, f32 MXU accumulation.

    tk=None collapses the whole K reduction into one grid step (no scratch accumulator).
    TODO(synk): at real sizes use tm=tn=256 on v6e/v7x (keep 128 on v5e's 128x128 MXU)
    and re-enable the K grid with tk sized against v7x's 64 MiB VMEM.
    """
    M, K = x.shape
    N = w.shape[1]
    tm, tn = min(tm, M), min(tn, N)
    tk = K if tk is None else min(tk, K)
    assert M % tm == 0 and N % tn == 0 and K % tk == 0

    if tk == K:
        return pl.pallas_call(
            functools.partial(_linear_fused_kernel, relu=relu),
            out_shape=jax.ShapeDtypeStruct((M, N), out_dtype),
            grid=(M // tm, N // tn),
            in_specs=[
                pl.BlockSpec((tm, K), lambda i, j: (i, 0)),
                pl.BlockSpec((K, tn), lambda i, j: (0, j)),
                pl.BlockSpec((1, tn), lambda i, j: (0, j)),
            ],
            out_specs=pl.BlockSpec((tm, tn), lambda i, j: (i, j)),
            compiler_params=_mosaic_params("parallel", "parallel"),
        )(x, w, b)

    return pl.pallas_call(
        functools.partial(_linear_kernel, relu=relu),
        out_shape=jax.ShapeDtypeStruct((M, N), out_dtype),
        grid=(M // tm, N // tn, K // tk),
        in_specs=[
            pl.BlockSpec((tm, tk), lambda i, j, k: (i, k)),
            pl.BlockSpec((tk, tn), lambda i, j, k: (k, j)),
            pl.BlockSpec((1, tn), lambda i, j, k: (0, j)),
        ],
        out_specs=pl.BlockSpec((tm, tn), lambda i, j, k: (i, j)),
        scratch_shapes=[pltpu.VMEM((tm, tn), jnp.float32)],
        compiler_params=_mosaic_params("parallel", "parallel", "arbitrary"),
    )(x, w, b)


# ----------------------------- fused RPN kernel -----------------------------

def _rpn_kernel(fp_ref, w3_ref, b3_ref, wa_ref, ba_ref, wb_ref, bb_ref, o_ref, *, hf, wf):
    c = fp_ref.shape[-1]
    wp = fp_ref.shape[1]
    # Single padded feature map (hf+2, wp, C); the three dx width shifts are produced
    # on-chip with XLU rolls (no 3x duplicated HBM input). Roll/slice on unpacked f32.
    fp32 = fp_ref[...].astype(jnp.float32)
    shifted = []
    for dx in range(3):
        s = fp32 if dx == 0 else pltpu.roll(fp32, shift=wp - dx, axis=1)
        # aligned sublane slice (offset 0, wf multiple of 8); wrapped tail cols are dropped
        shifted.append(s[:, :wf, :].astype(jnp.bfloat16))          # (hf+2, wf, C)
    # 3x3 "same" conv as ONE (m, 9C) x (9C, C) matmul: the 9 shifted windows are laid
    # side-by-side along lanes and conv1_w is pre-packed as (9*C, C) at init.
    wins = []
    for dy in range(3):
        for dx in range(3):
            wins.append(shifted[dx][dy:dy + hf].reshape(hf * wf, c))
    x9 = jnp.concatenate(wins, axis=-1)                            # (m, 9*C) bf16
    acc = jnp.dot(x9, w3_ref[...], preferred_element_type=jnp.float32)
    conv1 = jnp.maximum(acc + b3_ref[...], 0.0).astype(jnp.bfloat16)
    # Fused lane-dense 1x1 score/bbox heads (weights packed to 128 columns):
    #   ya columns: [fg logits (9) | bbox deltas (36) | 0],  yb columns: [bg logits (9) | 0]
    ya = jnp.dot(conv1, wa_ref[...], preferred_element_type=jnp.float32) + ba_ref[...]
    yb = jnp.dot(conv1, wb_ref[...], preferred_element_type=jnp.float32) + bb_ref[...]
    # Elementwise bg/fg pair softmax: p_fg = exp(fg)/(exp(fg)+exp(bg)) = 1/(1+exp(bg-fg)).
    p_fg = 1.0 / (1.0 + jnp.exp(yb - ya))
    col = jax.lax.broadcasted_iota(jnp.int32, ya.shape, 1)
    o_ref[...] = jnp.where(col < N_ANCHORS, p_fg, ya)             # [fg_prob(9) | bbox(36) | pad]


def rpn_head(fp, w3, b3, wa, ba, wb, bb, hf, wf):
    # TODO(synk): at real feature-map sizes tile over rows with halo blocks (and mark that
    # axis "parallel" so v7x's second TensorCore gets work) instead of grid=(1,), and bound
    # the live f32 accumulator by accumulating into a VMEM scratch.
    assert wf % 8 == 0, "feature-map width must be a sublane multiple for the fused conv"
    m = hf * wf
    hp, wp, c = fp.shape
    return pl.pallas_call(
        functools.partial(_rpn_kernel, hf=hf, wf=wf),
        out_shape=jax.ShapeDtypeStruct((m, RPN_HEAD_N), jnp.float32),
        grid=(1,),
        in_specs=[
            pl.BlockSpec((hp, wp, c), lambda i: (0, 0, 0)),
            pl.BlockSpec((9 * c, c), lambda i: (0, 0)),
            pl.BlockSpec((1, c), lambda i: (0, 0)),
            pl.BlockSpec((c, RPN_HEAD_N), lambda i: (0, 0)),
            pl.BlockSpec((1, RPN_HEAD_N), lambda i: (0, 0)),
            pl.BlockSpec((c, RPN_HEAD_N), lambda i: (0, 0)),
            pl.BlockSpec((1, RPN_HEAD_N), lambda i: (0, 0)),
        ],
        out_specs=pl.BlockSpec((m, RPN_HEAD_N), lambda i: (0, 0)),
        compiler_params=_mosaic_params("arbitrary"),
    )(fp, w3, b3, wa, ba, wb, bb)


# ----------------------------- ROI pooling kernel -----------------------------

def _roi_pool_kernel(rois_ref, feat_ref, o_ref, *, hf, wf):
    # rois_ref: SMEM int32 [R, 4] = (x1, y1, x2, y2) in feature-map coordinates
    # feat_ref: VMEM [hf, wf, C] backbone feature map (channels on lanes), bf16
    # o_ref:    VMEM [1, POOL*POOL*C] -- one lane-dense row per ROI, [px, py, c] order
    i = pl.program_id(0)
    x1 = rois_ref[i, 0]
    y1 = rois_ref[i, 1]
    x2 = rois_ref[i, 2]
    y2 = rois_ref[i, 3]
    hh = y2 - y1 + 1
    ww = x2 - x1 + 1
    feat = feat_ref[...]                              # bf16; max is exact in bf16 -> no f32 cast
    neg = jnp.asarray(-jnp.inf, feat.dtype)
    row = jax.lax.broadcasted_iota(jnp.int32, (hf, 1, 1), 0)
    colw = jax.lax.broadcasted_iota(jnp.int32, (wf, 1), 0)
    # Separable adaptive max pool (matches AdaptiveMaxPool2d bin bounds): reduce rows into
    # the 7 row-bins first, then cols into col-bins; emit one lane-dense (1, 49*C) row.
    # TODO(synk): at real sizes read only rows [y1, y2] (bounded pl.ds / manual DMA) instead
    # of masking the whole resident map per ROI.
    row_maxes = []
    for py in range(POOL):
        hs = y1 + (py * hh) // POOL
        he = y1 + ((py + 1) * hh + POOL - 1) // POOL
        m = (row >= hs) & (row < he)
        row_maxes.append(jnp.max(jnp.where(m, feat, neg), axis=0))           # (wf, C)
    pieces = []
    for px in range(POOL):
        ws = x1 + (px * ww) // POOL
        we = x1 + ((px + 1) * ww + POOL - 1) // POOL
        mw = (colw >= ws) & (colw < we)                                      # (wf, 1)
        for py in range(POOL):
            pieces.append(jnp.max(jnp.where(mw, row_maxes[py], neg),
                                  axis=0, keepdims=True))                    # (1, C)
    o_ref[...] = jnp.concatenate(pieces, axis=-1).astype(o_ref.dtype)        # (1, 49*C)


def roi_pool(feat3d, rois_feat, hf, wf, c, n_rois):
    return pl.pallas_call(
        functools.partial(_roi_pool_kernel, hf=hf, wf=wf),
        out_shape=jax.ShapeDtypeStruct((n_rois, POOL * POOL * c), feat3d.dtype),
        grid_spec=pltpu.PrefetchScalarGridSpec(
            num_scalar_prefetch=1,
            grid=(n_rois,),
            in_specs=[pl.BlockSpec((hf, wf, c), lambda i, rois: (0, 0, 0))],
            out_specs=pl.BlockSpec((1, POOL * POOL * c), lambda i, rois: (i, 0)),
        ),
        compiler_params=_mosaic_params("parallel"),
    )(rois_feat, feat3d)


# ----------------------------- fused detection head -----------------------------

def _head_kernel(pooled_ref, w6_ref, b6_ref, w7_ref, b7_ref, wh_ref, bh_ref, o_ref,
                 *, n_classes):
    # Whole reduction resident in VMEM at these sizes -> single grid step, no accumulator.
    h6 = jnp.maximum(
        jnp.dot(pooled_ref[...], w6_ref[...], preferred_element_type=jnp.float32)
        + b6_ref[...], 0.0).astype(w7_ref.dtype)                              # fc6 + ReLU
    h7 = jnp.maximum(
        jnp.dot(h6, w7_ref[...], preferred_element_type=jnp.float32) + b7_ref[...],
        0.0).astype(wh_ref.dtype)                                             # fc7 + ReLU
    # fused score_fc / bbox_fc (columns [cls | bbox | 0]) -- dropout is identity in eval
    y = jnp.dot(h7, wh_ref[...], preferred_element_type=jnp.float32) + bh_ref[...]
    col = jax.lax.broadcasted_iota(jnp.int32, y.shape, 1)
    is_cls = col < n_classes
    ymask = jnp.where(is_cls, y, -jnp.inf)
    m = jnp.max(ymask, axis=-1, keepdims=True)
    e = jnp.exp(ymask - m)                         # exactly 0 in masked (bbox/pad) columns
    s = jnp.sum(e, axis=-1, keepdims=True)
    probs = e / s                                  # exact softmax (torch.softmax parity)
    o_ref[...] = jnp.where(is_cls, probs, y)       # [cls_prob | bbox_pred | 0 pad]


def rcnn_head(pooled, w6, b6, w7, b7, wh, bh, n_classes):
    # TODO(synk): at real sizes (FC_HIDDEN=4096, K=25088) re-enable a K/N-tiled grid with
    # tk sized against v7x's 64 MiB VMEM and pipeline_mode=pl.Buffered(3) on the w6 stream.
    R, K = pooled.shape
    F = w6.shape[1]
    return pl.pallas_call(
        functools.partial(_head_kernel, n_classes=n_classes),
        out_shape=jax.ShapeDtypeStruct((R, HEAD_N), jnp.float32),
        grid=(1,),
        in_specs=[
            pl.BlockSpec((R, K), lambda i: (0, 0)),
            pl.BlockSpec((K, F), lambda i: (0, 0)),
            pl.BlockSpec((1, F), lambda i: (0, 0)),
            pl.BlockSpec((F, F), lambda i: (0, 0)),
            pl.BlockSpec((1, F), lambda i: (0, 0)),
            pl.BlockSpec((F, HEAD_N), lambda i: (0, 0)),
            pl.BlockSpec((1, HEAD_N), lambda i: (0, 0)),
        ],
        out_specs=pl.BlockSpec((R, HEAD_N), lambda i: (0, 0)),
        compiler_params=_mosaic_params("arbitrary"),
    )(pooled, w6, b6, w7, b7, wh, bh)


# ----------------------------- plain-JAX glue -----------------------------

def _generate_anchors(base_size=16, ratios=(0.5, 1.0, 2.0), scales=(8, 16, 32)):
    anchors = []
    for r in ratios:
        for s in scales:
            size = float(base_size * s)
            w = size / np.sqrt(r)
            h = size * np.sqrt(r)
            anchors.append([-(w - 1.0) / 2.0, -(h - 1.0) / 2.0,
                            (w - 1.0) / 2.0, (h - 1.0) / 2.0])
    return np.array(anchors, dtype=np.float32)


def _bbox_transform_inv(boxes, deltas):
    widths = boxes[:, 2] - boxes[:, 0] + 1.0
    heights = boxes[:, 3] - boxes[:, 1] + 1.0
    ctr_x = boxes[:, 0] + 0.5 * widths
    ctr_y = boxes[:, 1] + 0.5 * heights
    dx, dy = deltas[:, 0], deltas[:, 1]
    # TODO(synk): standard impl clamps dw/dh with a log-ratio bound; simple clip used here.
    dw = jnp.clip(deltas[:, 2], -4.0, 4.0)
    dh = jnp.clip(deltas[:, 3], -4.0, 4.0)
    pcx = dx * widths + ctr_x
    pcy = dy * heights + ctr_y
    pw = jnp.exp(dw) * widths
    ph = jnp.exp(dh) * heights
    return jnp.stack([pcx - 0.5 * pw, pcy - 0.5 * ph,
                      pcx + 0.5 * pw, pcy + 0.5 * ph], axis=1)


class FasterRCNNPallas:
    """Inference-mode (eval) FasterRCNN forward with Pallas TPU kernels."""

    def __init__(self, classes, key):
        self.classes = classes
        self.n_classes = len(classes)
        ks = iter(jax.random.split(key, 16))
        s = 0.05

        def bf16w(k, shape):
            return (s * jax.random.normal(k, shape, jnp.float32)).astype(jnp.bfloat16)

        # backbone stand-in: stride-16 patch-embedding conv
        self.backbone_w = bf16w(next(ks), (3 * FEAT_STRIDE * FEAT_STRIDE, C_FEAT))
        self.backbone_b = jnp.zeros((1, C_FEAT), jnp.float32)
        # 3x3 RPN conv pre-packed as (9*C_in, C_out) slabs in tap order t = kh*3 + kw,
        # i.e. torch's [C_out, C_in, kh, kw] rearranged at init (free with random init).
        self.conv1_w = bf16w(next(ks), (9 * C_FEAT, C_FEAT))
        self.conv1_b = jnp.zeros((1, C_FEAT), jnp.float32)
        # 1x1 score (18 = 9 anchors x {bg,fg}, adjacent-channel pairs like permute+view(-1,2))
        # and bbox (36) convs, packed lane-dense: wa=[fg(9)|bbox(36)|0], wb=[bg(9)|0]
        score_w = s * jax.random.normal(next(ks), (C_FEAT, 2 * N_ANCHORS), jnp.float32)
        bbox_w = s * jax.random.normal(next(ks), (C_FEAT, 4 * N_ANCHORS), jnp.float32)
        self.rpn_wa = jnp.concatenate(
            [score_w[:, 1::2], bbox_w,
             jnp.zeros((C_FEAT, RPN_HEAD_N - 5 * N_ANCHORS), jnp.float32)],
            axis=1).astype(jnp.bfloat16)
        self.rpn_wb = jnp.concatenate(
            [score_w[:, 0::2],
             jnp.zeros((C_FEAT, RPN_HEAD_N - N_ANCHORS), jnp.float32)],
            axis=1).astype(jnp.bfloat16)
        self.rpn_ba = jnp.zeros((1, RPN_HEAD_N), jnp.float32)
        self.rpn_bb = jnp.zeros((1, RPN_HEAD_N), jnp.float32)
        # head: fc6 rows are laid out to match the [px, py, c]-flattened pooled rows that
        # the ROI-pool kernel emits (torch's NCHW flatten permutation folded in at init).
        self.fc6_w = bf16w(next(ks), (C_FEAT * POOL * POOL, FC_HIDDEN))
        self.fc6_b = jnp.zeros((1, FC_HIDDEN), jnp.float32)
        self.fc7_w = bf16w(next(ks), (FC_HIDDEN, FC_HIDDEN))
        self.fc7_b = jnp.zeros((1, FC_HIDDEN), jnp.float32)
        # fused cls/bbox head: columns [cls(n_classes) | bbox(4*n_classes) | 0] -> 128
        sc = s * jax.random.normal(next(ks), (FC_HIDDEN, self.n_classes), jnp.float32)
        bb = s * jax.random.normal(next(ks), (FC_HIDDEN, 4 * self.n_classes), jnp.float32)
        self.head_w = jnp.concatenate(
            [sc, bb, jnp.zeros((FC_HIDDEN, HEAD_N - 5 * self.n_classes), jnp.float32)],
            axis=1).astype(jnp.bfloat16)
        self.head_b = jnp.zeros((1, HEAD_N), jnp.float32)
        self.anchors = jnp.asarray(_generate_anchors(), dtype=jnp.float32)   # [9, 4]

    # -------- RPN proposal layer (simplified, plain JAX) --------
    def _proposal_layer(self, fg_prob, deltas, im_info, hf, wf):
        # TODO(synk): proposal_layer_py's NMS has no clean Pallas equivalent here;
        # proposals are selected by top-k foreground score only (no NMS).
        sy = jnp.arange(hf, dtype=jnp.float32) * FEAT_STRIDE
        sx = jnp.arange(wf, dtype=jnp.float32) * FEAT_STRIDE
        shift_x, shift_y = jnp.meshgrid(sx, sy)
        shifts = jnp.stack([shift_x, shift_y, shift_x, shift_y], axis=-1).reshape(hf * wf, 1, 4)
        anchors = (self.anchors[None, :, :] + shifts).reshape(-1, 4)      # [hf*wf*9, 4]
        boxes = _bbox_transform_inv(anchors, deltas)
        h_img, w_img = im_info[0, 0], im_info[0, 1]
        boxes = jnp.stack([
            jnp.clip(boxes[:, 0], 0.0, w_img - 1.0),
            jnp.clip(boxes[:, 1], 0.0, h_img - 1.0),
            jnp.clip(boxes[:, 2], 0.0, w_img - 1.0),
            jnp.clip(boxes[:, 3], 0.0, h_img - 1.0),
        ], axis=1)
        _, top_idx = jax.lax.top_k(fg_prob, N_PROPOSALS)
        rois = jnp.concatenate(
            [jnp.zeros((N_PROPOSALS, 1), jnp.float32), boxes[top_idx]], axis=1)
        return rois                                                       # [R, 5]

    def __call__(self, im_data, im_info):
        # im_data is NCHW like the PyTorch module; convert to NHWC for the kernels.
        x = jnp.transpose(im_data, (0, 2, 3, 1)).astype(jnp.float32)
        n, H, W, cin = x.shape
        hf, wf = H // FEAT_STRIDE, W // FEAT_STRIDE

        # --- backbone (stand-in for resnet18): stride-16 patch projection ---
        # TODO(synk): full resnet18 is not reproduced; a single stride-16 patch-embedding
        # conv (Pallas matmul + ReLU, single K step) stands in; patch extraction stays in XLA.
        patches = x.reshape(n, hf, FEAT_STRIDE, wf, FEAT_STRIDE, cin)
        patches = jnp.transpose(patches, (0, 1, 3, 2, 4, 5)).reshape(
            n * hf * wf, FEAT_STRIDE * FEAT_STRIDE * cin).astype(jnp.bfloat16)
        feat2d = linear_tiled(patches, self.backbone_w, self.backbone_b,
                              relu=True, out_dtype=jnp.bfloat16,
                              tm=n * hf * wf, tn=C_FEAT)                  # [hf*wf, C] bf16

        # --- fused RPN: 3x3 conv (one packed matmul) + ReLU + 1x1 heads + pair softmax ---
        # Only the single zero-padded map goes to HBM; width shifts are derived on-chip.
        feat3d = feat2d.reshape(hf, wf, C_FEAT)
        wp = ((wf + 2 + 7) // 8) * 8                                      # pad width to x8
        fp = jnp.pad(feat3d, ((1, 1), (1, wp - wf - 1), (0, 0)))          # (hf+2, wp, C)
        rpn_out = rpn_head(fp, self.conv1_w, self.conv1_b,
                           self.rpn_wa, self.rpn_ba, self.rpn_wb, self.rpn_bb, hf, wf)
        fg_prob = rpn_out[:, :N_ANCHORS].reshape(-1)                      # [hf*wf*9]
        deltas = rpn_out[:, N_ANCHORS:5 * N_ANCHORS].reshape(hf * wf * N_ANCHORS, 4)

        rois = self._proposal_layer(fg_prob, deltas, im_info, hf, wf)

        # --- ROI pooling (spatial_scale = 1/16, floor to int, adaptive 7x7 max) ---
        boxes = jnp.floor(rois[:, 1:5] * (1.0 / FEAT_STRIDE)).astype(jnp.int32)
        x1 = jnp.clip(boxes[:, 0], 0, wf - 1)
        y1 = jnp.clip(boxes[:, 1], 0, hf - 1)
        x2 = jnp.maximum(jnp.clip(boxes[:, 2], 0, wf - 1), x1)
        y2 = jnp.maximum(jnp.clip(boxes[:, 3], 0, hf - 1), y1)
        rois_feat = jnp.stack([x1, y1, x2, y2], axis=1).astype(jnp.int32)   # [R, 4]
        # lane-dense (R, 49*C) rows straight from the kernel -- no XLA reshape/relayout
        pooled = roi_pool(feat3d, rois_feat, hf, wf, C_FEAT, N_PROPOSALS)   # [R, 6272] bf16

        # --- fused head: fc6 -> fc7 -> cls/bbox -> softmax (dropout = identity in eval) ---
        head_out = rcnn_head(pooled, self.fc6_w, self.fc6_b, self.fc7_w, self.fc7_b,
                             self.head_w, self.head_b, self.n_classes)
        cls_prob = head_out[:, :self.n_classes]
        bbox_pred = head_out[:, self.n_classes:5 * self.n_classes]
        return cls_prob, bbox_pred, rois


if __name__ == "__main__":
    classes = ("__background__", "person", "car", "dog")
    key = jax.random.PRNGKey(0)
    k_param, k_data = jax.random.split(key)

    model = FasterRCNNPallas(classes, k_param)

    # small deterministic input, NCHW like the PyTorch module (feature map = 8x8)
    im_data = jax.random.normal(k_data, (1, 3, 128, 128), dtype=jnp.float32)
    im_info = jnp.array([[128.0, 128.0, 1.0]], dtype=jnp.float32)

    cls_prob, bbox_pred, rois = model(im_data, im_info)
    jax.block_until_ready((cls_prob, bbox_pred, rois))

    assert cls_prob.shape == (N_PROPOSALS, len(classes))
    assert bbox_pred.shape == (N_PROPOSALS, len(classes) * 4)
    assert rois.shape == (N_PROPOSALS, 5)
    assert bool(jnp.all(jnp.isfinite(cls_prob))) and bool(jnp.all(jnp.isfinite(bbox_pred)))
    # class softmax is exact -> rows sum to ~1
    assert bool(jnp.all(jnp.abs(jnp.sum(cls_prob, axis=1) - 1.0) < 1e-3))
    print("KERNEL_OK")
</pallas_src>

<mosaic_0001>
module attributes {stable_mosaic.version = 11 : i64} {
  func.func @_linear_fused_kernel(%arg0: i32, %arg1: i32, %arg2: memref<64x768xbf16, #tpu.memory_space<vmem>>, %arg3: memref<768x128xbf16, #tpu.memory_space<vmem>>, %arg4: memref<1x128xf32, #tpu.memory_space<vmem>>, %arg5: memref<64x128xbf16, #tpu.memory_space<vmem>>) attributes {dimension_semantics = [#tpu.dimension_semantics<parallel>, #tpu.dimension_semantics<parallel>], iteration_bounds = array<i64: 1, 1>, scalar_prefetch = 0 : i64, scratch_operands = 0 : i64, tpu.core_type = #tpu.core_type<tc>, window_params = [{transform_indices = @transform_0, window_bounds = array<i64: 64, 768>}, {transform_indices = @transform_1, window_bounds = array<i64: 768, 128>}, {transform_indices = @transform_2, window_bounds = array<i64: 1, 128>}, {transform_indices = @transform_3, window_bounds = array<i64: 64, 128>}]} {
    %c0 = arith.constant 0 : index
    %c0_0 = arith.constant 0 : index
    %0 = vector.load %arg2[%c0, %c0_0] : memref<64x768xbf16, #tpu.memory_space<vmem>>, vector<64x768xbf16>
    %c0_1 = arith.constant 0 : index
    %c0_2 = arith.constant 0 : index
    %1 = vector.load %arg3[%c0_1, %c0_2] : memref<768x128xbf16, #tpu.memory_space<vmem>>, vector<768x128xbf16>
    %cst = arith.constant dense<0.000000e+00> : vector<64x128xf32>
    %2 = tpu.matmul %0, %1, %cst {dimension_numbers = #tpu.dot_dimension_numbers<[1], [0], [0], [1], [0, 0, 1, 1], [], []>} : vector<64x768xbf16>, vector<768x128xbf16>, vector<64x128xf32> -> vector<64x128xf32>
    %c0_3 = arith.constant 0 : index
    %c0_4 = arith.constant 0 : index
    %3 = vector.load %arg4[%c0_3, %c0_4] : memref<1x128xf32, #tpu.memory_space<vmem>>, vector<1x128xf32>
    %4 = vector.broadcast %3 : vector<1x128xf32> to vector<64x128xf32>
    %5 = arith.addf %2, %4 : vector<64x128xf32>
    %cst_5 = arith.constant 0.000000e+00 : f32
    %6 = vector.broadcast %cst_5 : f32 to vector<64x128xf32>
    %7 = arith.maximumf %5, %6 : vector<64x128xf32>
    %8 = arith.truncf %7 : vector<64x128xf32> to vector<64x128xbf16>
    %c0_6 = arith.constant 0 : index
    %c0_7 = arith.constant 0 : index
    %9 = vector.load %arg5[%c0_6, %c0_7] : memref<64x128xbf16, #tpu.memory_space<vmem>>, vector<64x128xbf16>
    tpu.vector_store %arg5[%c0_6, %c0_7], %8 {strides = array<i32>} : memref<64x128xbf16, #tpu.memory_space<vmem>>, vector<64x128xbf16>,
    return
  }
  func.func @transform_0(%arg0: i32, %arg1: i32) -> (i32, i32) {
    %c0_i32 = arith.constant 0 : i32
    %c0_i32_0 = arith.constant 0 : i32
    return %arg0, %c0_i32 : i32, i32
  }
  func.func @transform_1(%arg0: i32, %arg1: i32) -> (i32, i32) {
    %c0_i32 = arith.constant 0 : i32
    %c0_i32_0 = arith.constant 0 : i32
    return %c0_i32, %arg1 : i32, i32
  }
  func.func @transform_2(%arg0: i32, %arg1: i32) -> (i32, i32) {
    %c0_i32 = arith.constant 0 : i32
    %c0_i32_0 = arith.constant 0 : i32
    return %c0_i32, %arg1 : i32, i32
  }
  func.func @transform_3(%arg0: i32, %arg1: i32) -> (i32, i32) {
    %c0_i32 = arith.constant 0 : i32
    return %arg0, %arg1 : i32, i32
  }
}

</mosaic_0001>

<llo_original>
// kernel: tpu_custom_call.1
$region0: #{tpu_custom_call.1}
  #allocation0 [shape = 'u32[]', space=smem, size = 0x4, offset = 0x4, fixed_abs, tag = 'smem constant byte address 0x4 - core index']
  #allocation1 [shape = 'u32[144,128]{1,0:T(1,128)}', space=vmem, size = 0x12000, scoped, tag = 'internal scratch']
  %s0 = inlined_call_operand.hbm [shape: bf16[64,768], index: 0, kind: input, shape index: {}]
  %s1 = inlined_call_operand.hbm [shape: bf16[768,128], index: 1, kind: input, shape index: {}]
  %s2 = inlined_call_operand.vmem [shape: f32[1,128], index: 2, kind: input, shape index: {}]
  %s3 = inlined_call_operand.hbm [shape: bf16[64,128], index: 3, kind: output, shape index: {}]
  %s4 = sld [smem:[#allocation0]]
  $region30: #{tpu_custom_call.1} parent=0
    _
  %s6 = ssub.s32 1, %s4
  %s7 = scalar_select 0, %s6, %s4
  $region1: #{tpu_custom_call.1} parent=0
    #allocation2 [shape = 'u8[98304]{0}', space=vmem, size = 0x18000, scoped, tag = 'input window, operand 0, single buffered']
    #allocation3 [shape = 's32[1]{0}', space=sflag, size = 0x4, scoped, tag = 'scoped memory for tpu_custom_call.1']
    #allocation4 [shape = 's32[1]{0}', space=sflag, size = 0x4, scoped, tag = 'scoped memory for tpu_custom_call.1']
    #allocation5 [shape = 'u8[196608]{0}', space=vmem, size = 0x30000, scoped, tag = 'input window, operand 1, single buffered']
    #allocation6 [shape = 's32[1]{0}', space=sflag, size = 0x4, scoped, tag = 'scoped memory for tpu_custom_call.1']
    #allocation7 [shape = 'u8[16384]{0}', space=vmem, size = 0x4000, scoped, tag = 'output window, operand 0, single buffered']
    %8 = vsyncpa [#allocation3], 0
    %9 = vsyncpa [#allocation6], 0
    %10 = vsyncpa [#allocation4], 0
    // Predicated region
    $region2: #{tpu_custom_call.1} parent=1 // pred_check
      _
    $region3: #{tpu_custom_call.1} parent=1 // pred_check_branch
      %12 = sbr.rel (0) target = $region5
    $region4: #{tpu_custom_call.1} parent=1 // pred_region
      %s14 = ssub.s32 3072, 3072
      %15 = vsyncadd [#allocation3], %s14
      %s16 = sshll.u32 [#allocation2], 4
      %s17 = int_to_ptr.vmem [resolvable:$true] %s16
      %22 = dma.hbm_to_vmem [thread:$0]  %s0, 3072, %s17, [#allocation3], 384, 384, 24
    $region5: #{tpu_custom_call.1} parent=1 // pred_fallthru
      _
    // Predicated region
    $region6: #{tpu_custom_call.1} parent=1 // pred_check
      _
    $region7: #{tpu_custom_call.1} parent=1 // pred_check_branch
      %24 = sbr.rel (0) target = $region9
    $region8: #{tpu_custom_call.1} parent=1 // pred_region
      %s26 = ssub.s32 6144, 6144
      %27 = vsyncadd [#allocation6], %s26
      %s28 = sshll.u32 [#allocation5], 4
      %s29 = int_to_ptr.vmem [resolvable:$true] %s28
      %34 = dma.hbm_to_vmem [thread:$0]  %s1, 6144, %s29, [#allocation6], 64, 64, 4
    $region9: #{tpu_custom_call.1} parent=1 // pred_fallthru
      _
    // Predicated region
    $region10: #{tpu_custom_call.1} parent=1 // pred_check
      _
    $region11: #{tpu_custom_call.1} parent=1 // pred_check_branch
      %36 = sbr.rel (0) target = $region13
    $region12: #{tpu_custom_call.1} parent=1 // pred_region
      _
    $region13: #{tpu_custom_call.1} parent=1 // pred_fallthru
      _
    // Predicated region
    $region14: #{tpu_custom_call.1} parent=1 // pred_check
      _
    $region15: #{tpu_custom_call.1} parent=1 // pred_check_branch
      %38 = sbr.rel (0) target = $region17
    $region16: #{tpu_custom_call.1} parent=1 // pred_region
      %39 = dma.done [#allocation3], 3072
    $region17: #{tpu_custom_call.1} parent=1 // pred_fallthru
      _
    // Predicated region
    $region18: #{tpu_custom_call.1} parent=1 // pred_check
      _
    $region19: #{tpu_custom_call.1} parent=1 // pred_check_branch
      %41 = sbr.rel (0) target = $region21
    $region20: #{tpu_custom_call.1} parent=1 // pred_region
      %42 = dma.done [#allocation6], 6144
    $region21: #{tpu_custom_call.1} parent=1 // pred_fallthru
      _
    %v44 = vld [vmem:[#allocation2] sm:$0xff]
    %v45 = vld [vmem:[#allocation2 + $0x8] sm:$0xff]
    %v46 = vld [vmem:[#allocation2 + $0x10] sm:$0xff]
    %v47 = vld [vmem:[#allocation2 + $0x18] sm:$0xff]
    %v48 = vld [vmem:[#allocation2 + $0x20] sm:$0xff]
    %v49 = vld [vmem:[#allocation2 + $0x28] sm:$0xff]
    %v50 = vld [vmem:[#allocation2 + $0x30] sm:$0xff]
    %v51 = vld [vmem:[#allocation2 + $0x38] sm:$0xff]
    %v52 = vld [vmem:[#allocation2 + $0x40] sm:$0xff]
    %v53 = vld [vmem:[#allocation2 + $0x48] sm:$0xff]
    %v54 = vld [vmem:[#allocation2 + $0x50] sm:$0xff]
    %v55 = vld [vmem:[#allocation2 + $0x58] sm:$0xff]
    %v56 = vld [vmem:[#allocation2 + $0x60] sm:$0xff]
    %v57 = vld [vmem:[#allocation2 + $0x68] sm:$0xff]
    %v58 = vld [vmem:[#allocation2 + $0x70] sm:$0xff]
    %v59 = vld [vmem:[#allocation2 + $0x78] sm:$0xff]
    %v60 = vld [vmem:[#allocation2 + $0x80] sm:$0xff]
    %v61 = vld [vmem:[#allocation2 + $0x88] sm:$0xff]
    %v62 = vld [vmem:[#allocation2 + $0x90] sm:$0xff]
    %v63 = vld [vmem:[#allocation2 + $0x98] sm:$0xff]
    %v64 = vld [vmem:[#allocation2 + $0xa0] sm:$0xff]
    %v65 = vld [vmem:[#allocation2 + $0xa8] sm:$0xff]
    %v66 = vld [vmem:[#allocation2 + $0xb0] sm:$0xff]
    %v67 = vld [vmem:[#allocation2 + $0xb8] sm:$0xff]
    %v68 = vld [vmem:[#allocation5] sm:$0xf]
    %v69 = vld [vmem:[#allocation5 + $0x4] sm:$0xf]
    %v70 = vld [vmem:[#allocation5 + $0x8] sm:$0xf]
    %v71 = vld [vmem:[#allocation5 + $0xc] sm:$0xf]
    %v72 = vld [vmem:[#allocation5 + $0x10] sm:$0xf]
    %v73 = vld [vmem:[#allocation5 + $0x14] sm:$0xf]
    %v74 = vld [vmem:[#allocation5 + $0x18] sm:$0xf]
    %v75 = vld [vmem:[#allocation5 + $0x1c] sm:$0xf]
    %v76 = vld [vmem:[#allocation5 + $0x20] sm:$0xf]
    %v77 = vld [vmem:[#allocation5 + $0x24] sm:$0xf]
    %v78 = vld [vmem:[#allocation5 + $0x28] sm:$0xf]
    %v79 = vld [vmem:[#allocation5 + $0x2c] sm:$0xf]
    %v80 = vld [vmem:[#allocation5 + $0x30] sm:$0xf]
    %v81 = vld [vmem:[#allocation5 + $0x34] sm:$0xf]
    %v82 = vld [vmem:[#allocation5 + $0x38] sm:$0xf]
    %v83 = vld [vmem:[#allocation5 + $0x3c] sm:$0xf]
    %v84 = vld [vmem:[#allocation5 + $0x40] sm:$0xf]
    %v85 = vld [vmem:[#allocation5 + $0x44] sm:$0xf]
    %v86 = vld [vmem:[#allocation5 + $0x48] sm:$0xf]
    %v87 = vld [vmem:[#allocation5 + $0x4c] sm:$0xf]
    %v88 = vld [vmem:[#allocation5 + $0x50] sm:$0xf]
    %v89 = vld [vmem:[#allocation5 + $0x54] sm:$0xf]
    %v90 = vld [vmem:[#allocation5 + $0x58] sm:$0xf]
    %v91 = vld [vmem:[#allocation5 + $0x5c] sm:$0xf]
    %v92 = vld [vmem:[#allocation5 + $0x60] sm:$0xf]
    %v93 = vld [vmem:[#allocation5 + $0x64] sm:$0xf]
    %v94 = vld [vmem:[#allocation5 + $0x68] sm:$0xf]
    %v95 = vld [vmem:[#allocation5 + $0x6c] sm:$0xf]
    %v96 = vld [vmem:[#allocation5 + $0x70] sm:$0xf]
    %v97 = vld [vmem:[#allocation5 + $0x74] sm:$0xf]
    %v98 = vld [vmem:[#allocation5 + $0x78] sm:$0xf]
    %v99 = vld [vmem:[#allocation5 + $0x7c] sm:$0xf]
    %v100 = vld [vmem:[#allocation5 + $0x80] sm:$0xf]
    %v101 = vld [vmem:[#allocation5 + $0x84] sm:$0xf]
    %v102 = vld [vmem:[#allocation5 + $0x88] sm:$0xf]
    %v103 = vld [vmem:[#allocation5 + $0x8c] sm:$0xf]
    %v104 = vld [vmem:[#allocation5 + $0x90] sm:$0xf]
    %v105 = vld [vmem:[#allocation5 + $0x94] sm:$0xf]
    %v106 = vld [vmem:[#allocation5 + $0x98] sm:$0xf]
    %v107 = vld [vmem:[#allocation5 + $0x9c] sm:$0xf]
    %v108 = vld [vmem:[#allocation5 + $0xa0] sm:$0xf]
    %v109 = vld [vmem:[#allocation5 + $0xa4] sm:$0xf]
    %v110 = vld [vmem:[#allocation5 + $0xa8] sm:$0xf]
    %v111 = vld [vmem:[#allocation5 + $0xac] sm:$0xf]
    %v112 = vld [vmem:[#allocation5 + $0xb0] sm:$0xf]
    %v113 = vld [vmem:[#allocation5 + $0xb4] sm:$0xf]
    %v114 = vld [vmem:[#allocation5 + $0xb8] sm:$0xf]
    %v115 = vld [vmem:[#allocation5 + $0xbc] sm:$0xf]
    %v116 = vld [vmem:[#allocation5 + $0xc0] sm:$0xf]
    %v117 = vld [vmem:[#allocation5 + $0xc4] sm:$0xf]
    %v118 = vld [vmem:[#allocation5 + $0xc8] sm:$0xf]
    %v119 = vld [vmem:[#allocation5 + $0xcc] sm:$0xf]
    %v120 = vld [vmem:[#allocation5 + $0xd0] sm:$0xf]
    %v121 = vld [vmem:[#allocation5 + $0xd4] sm:$0xf]
    %v122 = vld [vmem:[#allocation5 + $0xd8] sm:$0xf]
    %v123 = vld [vmem:[#allocation5 + $0xdc] sm:$0xf]
    %v124 = vld [vmem:[#allocation5 + $0xe0] sm:$0xf]
    %v125 = vld [vmem:[#allocation5 + $0xe4] sm:$0xf]
    %v126 = vld [vmem:[#allocation5 + $0xe8] sm:$0xf]
    %v127 = vld [vmem:[#allocation5 + $0xec] sm:$0xf]
    %v128 = vld [vmem:[#allocation5 + $0xf0] sm:$0xf]
    %v129 = vld [vmem:[#allocation5 + $0xf4] sm:$0xf]
    %v130 = vld [vmem:[#allocation5 + $0xf8] sm:$0xf]
    %v131 = vld [vmem:[#allocation5 + $0xfc] sm:$0xf]
    %v132 = vld [vmem:[#allocation5 + $0x100] sm:$0xf]
    %v133 = vld [vmem:[#allocation5 + $0x104] sm:$0xf]
    %v134 = vld [vmem:[#allocation5 + $0x108] sm:$0xf]
    %v135 = vld [vmem:[#allocation5 + $0x10c] sm:$0xf]
    %v136 = vld [vmem:[#allocation5 + $0x110] sm:$0xf]
    %v137 = vld [vmem:[#allocation5 + $0x114] sm:$0xf]
    %v138 = vld [vmem:[#allocation5 + $0x118] sm:$0xf]
    %v139 = vld [vmem:[#allocation5 + $0x11c] sm:$0xf]
    %v140 = vld [vmem:[#allocation5 + $0x120] sm:$0xf]
    %v141 = vld [vmem:[#allocation5 + $0x124] sm:$0xf]
    %v142 = vld [vmem:[#allocation5 + $0x128] sm:$0xf]
    %v143 = vld [vmem:[#allocation5 + $0x12c] sm:$0xf]
    %v144 = vld [vmem:[#allocation5 + $0x130] sm:$0xf]
    %v145 = vld [vmem:[#allocation5 + $0x134] sm:$0xf]
    %v146 = vld [vmem:[#allocation5 + $0x138] sm:$0xf]
    %v147 = vld [vmem:[#allocation5 + $0x13c] sm:$0xf]
    %v148 = vld [vmem:[#allocation5 + $0x140] sm:$0xf]
    %v149 = vld [vmem:[#allocation5 + $0x144] sm:$0xf]
    %v150 = vld [vmem:[#allocation5 + $0x148] sm:$0xf]
    %v151 = vld [vmem:[#allocation5 + $0x14c] sm:$0xf]
    %v152 = vld [vmem:[#allocation5 + $0x150] sm:$0xf]
    %v153 = vld [vmem:[#allocation5 + $0x154] sm:$0xf]
    %v154 = vld [vmem:[#allocation5 + $0x158] sm:$0xf]
    %v155 = vld [vmem:[#allocation5 + $0x15c] sm:$0xf]
    %v156 = vld [vmem:[#allocation5 + $0x160] sm:$0xf]
    %v157 = vld [vmem:[#allocation5 + $0x164] sm:$0xf]
    %v158 = vld [vmem:[#allocation5 + $0x168] sm:$0xf]
    %v159 = vld [vmem:[#allocation5 + $0x16c] sm:$0xf]
    %v160 = vld [vmem:[#allocation5 + $0x170] sm:$0xf]
    %v161 = vld [vmem:[#allocation5 + $0x174] sm:$0xf]
    %v162 = vld [vmem:[#allocation5 + $0x178] sm:$0xf]
    %v163 = vld [vmem:[#allocation5 + $0x17c] sm:$0xf]
    %v164 = vld [vmem:[%s2] sm:$0x1]
    %v166 = vlaneseq
    %v167 = vshrl.u32 %v166, 7
    %v168 = vsub.s32 0, %v167
    %v169 = vrot.slane %v164, %v168
    %v195 = vunpack.c.l.b16 %v44
    %v196 = vunpack.c.h.b16 %v44
    %v197 = vunpack.c.l.b16 %v45
    %v198 = vunpack.c.h.b16 %v45
    %v199 = vunpack.c.l.b16 %v46
    %v200 = vunpack.c.h.b16 %v46
    %v201 = vunpack.c.l.b16 %v47
    %v202 = vunpack.c.h.b16 %v47
    %v203 = vunpack.c.l.b16 %v48
    %v204 = vunpack.c.h.b16 %v48
    %v205 = vunpack.c.l.b16 %v49
    %v206 = vunpack.c.h.b16 %v49
    %v207 = vunpack.c.l.b16 %v50
    %v208 = vunpack.c.h.b16 %v50
    %v209 = vunpack.c.l.b16 %v51
    %v210 = vunpack.c.h.b16 %v51
    %v211 = vunpack.c.l.b16 %v52
    %v212 = vunpack.c.h.b16 %v52
    %v213 = vunpack.c.l.b16 %v53
    %v214 = vunpack.c.h.b16 %v53
    %v215 = vunpack.c.l.b16 %v54
    %v216 = vunpack.c.h.b16 %v54
    %v217 = vunpack.c.l.b16 %v55
    %v218 = vunpack.c.h.b16 %v55
    %v219 = vunpack.c.l.b16 %v56
    %v220 = vunpack.c.h.b16 %v56
    %v221 = vunpack.c.l.b16 %v57
    %v222 = vunpack.c.h.b16 %v57
    %v223 = vunpack.c.l.b16 %v58
    %v224 = vunpack.c.h.b16 %v58
    %v225 = vunpack.c.l.b16 %v59
    %v226 = vunpack.c.h.b16 %v59
    %v227 = vunpack.c.l.b16 %v60
    %v228 = vunpack.c.h.b16 %v60
    %v229 = vunpack.c.l.b16 %v61
    %v230 = vunpack.c.h.b16 %v61
    %v231 = vunpack.c.l.b16 %v62
    %v232 = vunpack.c.h.b16 %v62
    %v233 = vunpack.c.l.b16 %v63
    %v234 = vunpack.c.h.b16 %v63
    %v235 = vunpack.c.l.b16 %v64
    %v236 = vunpack.c.h.b16 %v64
    %v237 = vunpack.c.l.b16 %v65
    %v238 = vunpack.c.h.b16 %v65
    %v239 = vunpack.c.l.b16 %v66
    %v240 = vunpack.c.h.b16 %v66
    %v241 = vunpack.c.l.b16 %v67
    %v242 = vunpack.c.h.b16 %v67
    %v243 = vpack.c.b16 %v201, %v195
    %v244 = vpack.c.b16 %v202, %v196
    %v245 = vpack.c.b16 %v203, %v197
    %v246 = vpack.c.b16 %v204, %v198
    %v247 = vpack.c.b16 %v205, %v199
    %v248 = vpack.c.b16 %v206, %v200
    %v249 = vpack.c.b16 %v213, %v207
    %v250 = vpack.c.b16 %v214, %v208
    %v251 = vpack.c.b16 %v215, %v209
    %v252 = vpack.c.b16 %v216, %v210
    %v253 = vpack.c.b16 %v217, %v211
    %v254 = vpack.c.b16 %v218, %v212
    %v255 = vpack.c.b16 %v225, %v219
    %v256 = vpack.c.b16 %v226, %v220
    %v257 = vpack.c.b16 %v227, %v221
    %v258 = vpack.c.b16 %v228, %v222
    %v259 = vpack.c.b16 %v229, %v223
    %v260 = vpack.c.b16 %v230, %v224
    %v261 = vpack.c.b16 %v237, %v231
    %v262 = vpack.c.b16 %v238, %v232
    %v263 = vpack.c.b16 %v239, %v233
    %v264 = vpack.c.b16 %v240, %v234
    %v265 = vpack.c.b16 %v241, %v235
    %v266 = vpack.c.b16 %v242, %v236
    %v387 = vunpack.c.l.b16 %v68
    %v388 = vunpack.c.l.b16 %v69
    %v389 = vunpack.c.l.b16 %v70
    %v390 = vunpack.c.l.b16 %v71
    %v391 = vunpack.c.l.b16 %v72
    %v392 = vunpack.c.l.b16 %v73
    %v393 = vunpack.c.l.b16 %v74
    %v394 = vunpack.c.l.b16 %v75
    %v395 = vunpack.c.l.b16 %v76
    %v396 = vunpack.c.l.b16 %v77
    %v397 = vunpack.c.l.b16 %v78
    %v398 = vunpack.c.l.b16 %v79
    %v399 = vunpack.c.l.b16 %v80
    %v400 = vunpack.c.l.b16 %v81
    %v401 = vunpack.c.l.b16 %v82
    %v402 = vunpack.c.l.b16 %v83
    %v403 = vunpack.c.l.b16 %v84
    %v404 = vunpack.c.l.b16 %v85
    %v405 = vunpack.c.l.b16 %v86
    %v406 = vunpack.c.l.b16 %v87
    %v407 = vunpack.c.l.b16 %v88
    %v408 = vunpack.c.l.b16 %v89
    %v409 = vunpack.c.l.b16 %v90
    %v410 = vunpack.c.l.b16 %v91
    %v411 = vunpack.c.l.b16 %v92
    %v412 = vunpack.c.l.b16 %v93
    %v413 = vunpack.c.l.b16 %v94
    %v414 = vunpack.c.l.b16 %v95
    %v415 = vunpack.c.l.b16 %v96
    %v416 = vunpack.c.l.b16 %v97
    %v417 = vunpack.c.l.b16 %v98
    %v418 = vunpack.c.l.b16 %v99
    %v419 = vunpack.c.l.b16 %v100
    %v420 = vunpack.c.l.b16 %v101
    %v421 = vunpack.c.l.b16 %v102
    %v422 = vunpack.c.l.b16 %v103
    %v423 = vunpack.c.l.b16 %v104
    %v424 = vunpack.c.l.b16 %v105
    %v425 = vunpack.c.l.b16 %v106
    %v426 = vunpack.c.l.b16 %v107
    %v427 = vunpack.c.l.b16 %v108
    %v428 = vunpack.c.l.b16 %v109
    %v429 = vunpack.c.l.b16 %v110
    %v430 = vunpack.c.l.b16 %v111
    %v431 = vunpack.c.l.b16 %v112
    %v432 = vunpack.c.l.b16 %v113
    %v433 = vunpack.c.l.b16 %v114
    %v434 = vunpack.c.l.b16 %v115
    %v435 = vunpack.c.l.b16 %v116
    %v436 = vunpack.c.l.b16 %v117
    %v437 = vunpack.c.l.b16 %v118
    %v438 = vunpack.c.l.b16 %v119
    %v439 = vunpack.c.l.b16 %v120
    %v440 = vunpack.c.l.b16 %v121
    %v441 = vunpack.c.l.b16 %v122
    %v442 = vunpack.c.l.b16 %v123
    %v443 = vunpack.c.l.b16 %v124
    %v444 = vunpack.c.l.b16 %v125
    %v445 = vunpack.c.l.b16 %v126
    %v446 = vunpack.c.l.b16 %v127
    %v447 = vunpack.c.l.b16 %v128
    %v448 = vunpack.c.l.b16 %v129
    %v449 = vunpack.c.l.b16 %v130
    %v450 = vunpack.c.l.b16 %v131
    %v451 = vunpack.c.l.b16 %v132
    %v452 = vunpack.c.l.b16 %v133
    %v453 = vunpack.c.l.b16 %v134
    %v454 = vunpack.c.l.b16 %v135
    %v455 = vunpack.c.l.b16 %v136
    %v456 = vunpack.c.l.b16 %v137
    %v457 = vunpack.c.l.b16 %v138
    %v458 = vunpack.c.l.b16 %v139
    %v459 = vunpack.c.l.b16 %v140
    %v460 = vunpack.c.l.b16 %v141
    %v461 = vunpack.c.l.b16 %v142
    %v462 = vunpack.c.l.b16 %v143
    %v463 = vunpack.c.l.b16 %v144
    %v464 = vunpack.c.l.b16 %v145
    %v465 = vunpack.c.l.b16 %v146
    %v466 = vunpack.c.l.b16 %v147
    %v467 = vunpack.c.l.b16 %v148
    %v468 = vunpack.c.l.b16 %v149
    %v469 = vunpack.c.l.b16 %v150
    %v470 = vunpack.c.l.b16 %v151
    %v471 = vunpack.c.l.b16 %v152
    %v472 = vunpack.c.l.b16 %v153
    %v473 = vunpack.c.l.b16 %v154
    %v474 = vunpack.c.l.b16 %v155
    %v475 = vunpack.c.l.b16 %v156
    %v476 = vunpack.c.l.b16 %v157
    %v477 = vunpack.c.l.b16 %v158
    %v478 = vunpack.c.l.b16 %v159
    %v479 = vunpack.c.l.b16 %v160
    %v480 = vunpack.c.l.b16 %v161
    %v481 = vunpack.c.l.b16 %v162
    %v482 = vunpack.c.l.b16 %v163
    %v483 = vpack.c.b16 %v388, %v387
    %v484 = vpack.c.b16 %v390, %v389
    %v485 = vpack.c.b16 %v392, %v391
    %v486 = vpack.c.b16 %v394, %v393
    %v487 = vpack.c.b16 %v396, %v395
    %v488 = vpack.c.b16 %v398, %v397
    %v489 = vpack.c.b16 %v400, %v399
    %v490 = vpack.c.b16 %v402, %v401
    %v491 = vpack.c.b16 %v404, %v403
    %v492 = vpack.c.b16 %v406, %v405
    %v493 = vpack.c.b16 %v408, %v407
    %v494 = vpack.c.b16 %v410, %v409
    %v495 = vpack.c.b16 %v412, %v411
    %v496 = vpack.c.b16 %v414, %v413
    %v497 = vpack.c.b16 %v416, %v415
    %v498 = vpack.c.b16 %v418, %v417
    %v499 = vpack.c.b16 %v420, %v419
    %v500 = vpack.c.b16 %v422, %v421
    %v501 = vpack.c.b16 %v424, %v423
    %v502 = vpack.c.b16 %v426, %v425
    %v503 = vpack.c.b16 %v428, %v427
    %v504 = vpack.c.b16 %v430, %v429
    %v505 = vpack.c.b16 %v432, %v431
    %v506 = vpack.c.b16 %v434, %v433
    %v507 = vpack.c.b16 %v436, %v435
    %v508 = vpack.c.b16 %v438, %v437
    %v509 = vpack.c.b16 %v440, %v439
    %v510 = vpack.c.b16 %v442, %v441
    %v511 = vpack.c.b16 %v444, %v443
    %v512 = vpack.c.b16 %v446, %v445
    %v513 = vpack.c.b16 %v448, %v447
    %v514 = vpack.c.b16 %v450, %v449
    %v515 = vpack.c.b16 %v452, %v451
    %v516 = vpack.c.b16 %v454, %v453
    %v517 = vpack.c.b16 %v456, %v455
    %v518 = vpack.c.b16 %v458, %v457
    %v519 = vpack.c.b16 %v460, %v459
    %v520 = vpack.c.b16 %v462, %v461
    %v521 = vpack.c.b16 %v464, %v463
    %v522 = vpack.c.b16 %v466, %v465
    %v523 = vpack.c.b16 %v468, %v467
    %v524 = vpack.c.b16 %v470, %v469
    %v525 = vpack.c.b16 %v472, %v471
    %v526 = vpack.c.b16 %v474, %v473
    %v527 = vpack.c.b16 %v476, %v475
    %v528 = vpack.c.b16 %v478, %v477
    %v529 = vpack.c.b16 %v480, %v479
    %v530 = vpack.c.b16 %v482, %v481
    %579 = vmatprep.subr.bf16.mxu0 0
    %580 = vmatpush1.bf16.msra.mxu0 %v483
    %581 = vmatprep.subr.bf16.mxu0 0
    %582 = vmatpush1.bf16.msra.mxu0 %v484
    %583 = vmatprep.subr.bf16.mxu0 0
    %584 = vmatpush1.bf16.msra.mxu0 %v485
    %585 = vmatprep.subr.bf16.mxu0 0
    %586 = vmatpush1.bf16.msra.mxu0 %v486
    %587 = vmatprep.subr.bf16.mxu0 0
    %588 = vmatpush1.bf16.msra.mxu0 %v487
    %589 = vmatprep.subr.bf16.mxu0 0
    %590 = vmatpush1.bf16.msra.mxu0 %v488
    %591 = vmatprep.subr.bf16.mxu0 0
    %592 = vmatpush1.bf16.msra.mxu0 %v489
    %593 = vmatprep.subr.bf16.mxu0 0
    %594 = vmatpush1.bf16.msra.mxu0 %v490
    %595 = vmatprep.subr.bf16.mxu0 0
    %596 = vmatpush1.bf16.msra.mxu0 %v491
    %597 = vmatprep.subr.bf16.mxu0 0
    %598 = vmatpush1.bf16.msra.mxu0 %v492
    %599 = vmatprep.subr.bf16.mxu0 0
    %600 = vmatpush1.bf16.msra.mxu0 %v493
    %601 = vmatprep.subr.bf16.mxu0 0
    %602 = vmatpush1.bf16.msra.mxu0 %v494
    %603 = vmatprep.subr.bf16.mxu0 0
    %604 = vmatpush1.bf16.msra.mxu0 %v495
    %605 = vmatprep.subr.bf16.mxu0 0
    %606 = vmatpush1.bf16.msra.mxu0 %v496
    %607 = vmatprep.subr.bf16.mxu0 0
    %608 = vmatpush1.bf16.msra.mxu0 %v497
    %609 = vmatprep.subr.bf16.mxu0 0
    %610 = vmatpush1.bf16.msra.mxu0 %v498
    %611 = vmatprep.mubr.bf16.mxu0 %v244
    %612 = vmatmul.mubr.bf16.gmra.mrb[0].mxu0 %v243
    %v613 = vpop.f32.mrb[0].mxu0
    %v614 = vadd.f32 %v169, %v613
    %v615 = vpop.f32.mrb[0].mxu0
    %v616 = vpop.f32.mrb[0].mxu0
    %v617 = vadd.f32 %v169, %v616
    %v618 = vpop.f32.mrb[0].mxu0
    %619 = vmatprep.mubr.bf16.mxu0 %v250
    %620 = vmatmul.mubr.bf16.gmra.mrb[0].mxu0 %v249
    %v621 = vpop.f32.mrb[0].mxu0
    %v622 = vadd.f32 %v169, %v621
    %v623 = vpop.f32.mrb[0].mxu0
    %v624 = vpop.f32.mrb[0].mxu0
    %v625 = vadd.f32 %v169, %v624
    %v626 = vpop.f32.mrb[0].mxu0
    %627 = vmatprep.mubr.bf16.mxu0 %v256
    %628 = vmatmul.mubr.bf16.gmra.mrb[0].mxu0 %v255
    %v629 = vpop.f32.mrb[0].mxu0
    %v630 = vadd.f32 %v169, %v629
    %v631 = vpop.f32.mrb[0].mxu0
    %v632 = vpop.f32.mrb[0].mxu0
    %v633 = vadd.f32 %v169, %v632
    %v634 = vpop.f32.mrb[0].mxu0
    %635 = vmatprep.mubr.bf16.mxu0 %v262
    %636 = vmatmul.mubr.bf16.gmra.mrb[0].mxu0 %v261
    %v637 = vpop.f32.mrb[0].mxu0
    %v638 = vadd.f32 %v169, %v637
    %v639 = vpop.f32.mrb[0].mxu0
    %v640 = vpop.f32.mrb[0].mxu0
    %v641 = vadd.f32 %v169, %v640
    %v642 = vpop.f32.mrb[0].mxu0
    %643 = vdwg.mxu0
    %644 = vmatprep.subr.bf16.mxu0 0
    %645 = vmatpush1.bf16.msra.mxu0 %v499
    %646 = vmatprep.subr.bf16.mxu0 0
    %647 = vmatpush1.bf16.msra.mxu0 %v500
    %648 = vmatprep.subr.bf16.mxu0 0
    %649 = vmatpush1.bf16.msra.mxu0 %v501
    %650 = vmatprep.subr.bf16.mxu0 0
    %651 = vmatpush1.bf16.msra.mxu0 %v502
    %652 = vmatprep.subr.bf16.mxu0 0
    %653 = vmatpush1.bf16.msra.mxu0 %v503
    %654 = vmatprep.subr.bf16.mxu0 0
    %655 = vmatpush1.bf16.msra.mxu0 %v504
    %656 = vmatprep.subr.bf16.mxu0 0
    %657 = vmatpush1.bf16.msra.mxu0 %v505
    %658 = vmatprep.subr.bf16.mxu0 0
    %659 = vmatpush1.bf16.msra.mxu0 %v506
    %660 = vmatprep.subr.bf16.mxu0 0
    %661 = vmatpush1.bf16.msra.mxu0 %v507
    %662 = vmatprep.subr.bf16.mxu0 0
    %663 = vmatpush1.bf16.msra.mxu0 %v508
    %664 = vmatprep.subr.bf16.mxu0 0
    %665 = vmatpush1.bf16.msra.mxu0 %v509
    %666 = vmatprep.subr.bf16.mxu0 0
    %667 = vmatpush1.bf16.msra.mxu0 %v510
    %668 = vmatprep.subr.bf16.mxu0 0
    %669 = vmatpush1.bf16.msra.mxu0 %v511
    %670 = vmatprep.subr.bf16.mxu0 0
    %671 = vmatpush1.bf16.msra.mxu0 %v512
    %672 = vmatprep.subr.bf16.mxu0 0
    %673 = vmatpush1.bf16.msra.mxu0 %v513
    %674 = vmatprep.subr.bf16.mxu0 0
    %675 = vmatpush1.bf16.msra.mxu0 %v514
    %676 = vmatprep.mubr.bf16.mxu0 %v246
    %677 = vmatmul.mubr.bf16.gmra.mrb[0].mxu0 %v245
    %v678 = vpop.f32.mrb[0].mxu0
    %v679 = vadd.f32 %v614, %v678
    %v680 = vpop.f32.mrb[0].mxu0
    %v681 = vpop.f32.mrb[0].mxu0
    %v682 = vadd.f32 %v617, %v681
    %v683 = vpop.f32.mrb[0].mxu0
    %684 = vmatprep.mubr.bf16.mxu0 %v252
    %685 = vmatmul.mubr.bf16.gmra.mrb[0].mxu0 %v251
    %v686 = vpop.f32.mrb[0].mxu0
    %v687 = vadd.f32 %v622, %v686
    %v688 = vpop.f32.mrb[0].mxu0
    %v689 = vpop.f32.mrb[0].mxu0
    %v690 = vadd.f32 %v625, %v689
    %v691 = vpop.f32.mrb[0].mxu0
    %692 = vmatprep.mubr.bf16.mxu0 %v258
    %693 = vmatmul.mubr.bf16.gmra.mrb[0].mxu0 %v257
    %v694 = vpop.f32.mrb[0].mxu0
    %v695 = vadd.f32 %v630, %v694
    %v696 = vpop.f32.mrb[0].mxu0
    %v697 = vpop.f32.mrb[0].mxu0
    %v698 = vadd.f32 %v633, %v697
    %v699 = vpop.f32.mrb[0].mxu0
    %700 = vmatprep.mubr.bf16.mxu0 %v264
    %701 = vmatmul.mubr.bf16.gmra.mrb[0].mxu0 %v263
    %v702 = vpop.f32.mrb[0].mxu0
    %v703 = vadd.f32 %v638, %v702
    %v704 = vpop.f32.mrb[0].mxu0
    %v705 = vpop.f32.mrb[0].mxu0
    %v706 = vadd.f32 %v641, %v705
    %v707 = vpop.f32.mrb[0].mxu0
    %708 = vdwg.mxu0
    %709 = vmatprep.subr.bf16.mxu0 0
    %710 = vmatpush1.bf16.msra.mxu0 %v515
    %711 = vmatprep.subr.bf16.mxu0 0
    %712 = vmatpush1.bf16.msra.mxu0 %v516
    %713 = vmatprep.subr.bf16.mxu0 0
    %714 = vmatpush1.bf16.msra.mxu0 %v517
    %715 = vmatprep.subr.bf16.mxu0 0
    %716 = vmatpush1.bf16.msra.mxu0 %v518
    %717 = vmatprep.subr.bf16.mxu0 0
    %718 = vmatpush1.bf16.msra.mxu0 %v519
    %719 = vmatprep.subr.bf16.mxu0 0
    %720 = vmatpush1.bf16.msra.mxu0 %v520
    %721 = vmatprep.subr.bf16.mxu0 0
    %722 = vmatpush1.bf16.msra.mxu0 %v521
    %723 = vmatprep.subr.bf16.mxu0 0
    %724 = vmatpush1.bf16.msra.mxu0 %v522
    %725 = vmatprep.subr.bf16.mxu0 0
    %726 = vmatpush1.bf16.msra.mxu0 %v523
    %727 = vmatprep.subr.bf16.mxu0 0
    %728 = vmatpush1.bf16.msra.mxu0 %v524
    %729 = vmatprep.subr.bf16.mxu0 0
    %730 = vmatpush1.bf16.msra.mxu0 %v525
    %731 = vmatprep.subr.bf16.mxu0 0
    %732 = vmatpush1.bf16.msra.mxu0 %v526
    %733 = vmatprep.subr.bf16.mxu0 0
    %734 = vmatpush1.bf16.msra.mxu0 %v527
    %735 = vmatprep.subr.bf16.mxu0 0
    %736 = vmatpush1.bf16.msra.mxu0 %v528
    %737 = vmatprep.subr.bf16.mxu0 0
    %738 = vmatpush1.bf16.msra.mxu0 %v529
    %739 = vmatprep.subr.bf16.mxu0 0
    %740 = vmatpush1.bf16.msra.mxu0 %v530
    %741 = vmatprep.mubr.bf16.mxu0 %v248
    %742 = vmatmul.mubr.bf16.gmra.mrb[0].mxu0 %v247
    %v743 = vpop.f32.mrb[0].mxu0
    %v744 = vadd.f32 %v679, %v743
    %v745 = vpop.f32.mrb[0].mxu0
    %v746 = vpop.f32.mrb[0].mxu0
    %v747 = vadd.f32 %v682, %v746
    %v748 = vpop.f32.mrb[0].mxu0
    %749 = vmatprep.mubr.bf16.mxu0 %v254
    %750 = vmatmul.mubr.bf16.gmra.mrb[0].mxu0 %v253
    %v751 = vpop.f32.mrb[0].mxu0
    %v752 = vadd.f32 %v687, %v751
    %v753 = vpop.f32.mrb[0].mxu0
    %v754 = vpop.f32.mrb[0].mxu0
    %v755 = vadd.f32 %v690, %v754
    %v756 = vpop.f32.mrb[0].mxu0
    %757 = vmatprep.mubr.bf16.mxu0 %v260
    %758 = vmatmul.mubr.bf16.gmra.mrb[0].mxu0 %v259
    %v759 = vpop.f32.mrb[0].mxu0
    %v760 = vadd.f32 %v695, %v759
    %v761 = vpop.f32.mrb[0].mxu0
    %v762 = vpop.f32.mrb[0].mxu0
    %v763 = vadd.f32 %v698, %v762
    %v764 = vpop.f32.mrb[0].mxu0
    %765 = vmatprep.mubr.bf16.mxu0 %v266
    %766 = vmatmul.mubr.bf16.gmra.mrb[0].mxu0 %v265
    %v767 = vpop.f32.mrb[0].mxu0
    %v768 = vadd.f32 %v703, %v767
    %v769 = vpop.f32.mrb[0].mxu0
    %v770 = vpop.f32.mrb[0].mxu0
    %v771 = vadd.f32 %v706, %v770
    %v772 = vpop.f32.mrb[0].mxu0
    %773 = vdwg.mxu0
    %v774 = vmax.f32 %v744, 0.0
    %v775 = vmax.f32 %v747, 0.0
    %v776 = vmax.f32 %v752, 0.0
    %v777 = vmax.f32 %v755, 0.0
    %v778 = vmax.f32 %v760, 0.0
    %v779 = vmax.f32 %v763, 0.0
    %v780 = vmax.f32 %v768, 0.0
    %v781 = vmax.f32 %v771, 0.0
    %v782 = vpack.c.bf16 %v775, %v774
    %v783 = vpack.c.bf16 %v777, %v776
    %v784 = vpack.c.bf16 %v779, %v778
    %v785 = vpack.c.bf16 %v781, %v780
    %v790 = vunpack.c.l.b16 %v782
    %v791 = vunpack.c.h.b16 %v782
    %v792 = vunpack.c.l.b16 %v783
    %v793 = vunpack.c.h.b16 %v783
    %v794 = vunpack.c.l.b16 %v784
    %v795 = vunpack.c.h.b16 %v784
    %v796 = vunpack.c.l.b16 %v785
    %v797 = vunpack.c.h.b16 %v785
    %v798 = vpack.c.b16 %v790, %v790
    %v799 = vpack.c.b16 %v791, %v791
    %v800 = vpack.c.b16 %v792, %v792
    %v801 = vpack.c.b16 %v793, %v793
    %v802 = vpack.c.b16 %v794, %v794
    %v803 = vpack.c.b16 %v795, %v795
    %v804 = vpack.c.b16 %v796, %v796
    %v805 = vpack.c.b16 %v797, %v797
    %814 = vst [vmem:[#allocation7] sm:$0xf] %v798
    %815 = vst [vmem:[#allocation7 + $0x4] sm:$0xf] %v799
    %816 = vst [vmem:[#allocation7 + $0x8] sm:$0xf] %v800
    %817 = vst [vmem:[#allocation7 + $0xc] sm:$0xf] %v801
    %818 = vst [vmem:[#allocation7 + $0x10] sm:$0xf] %v802
    %819 = vst [vmem:[#allocation7 + $0x14] sm:$0xf] %v803
    %820 = vst [vmem:[#allocation7 + $0x18] sm:$0xf] %v804
    %821 = vst [vmem:[#allocation7 + $0x1c] sm:$0xf] %v805
    // Predicated region
    $region22: #{tpu_custom_call.1} parent=1 // pred_check
      _
    $region23: #{tpu_custom_call.1} parent=1 // pred_check_branch
      %823 = sbr.rel (0) target = $region25
    $region24: #{tpu_custom_call.1} parent=1 // pred_region
      %s825 = ssub.s32 512, 512
      %826 = vsyncadd [#allocation4], %s825
      %s827 = sshll.u32 [#allocation7], 4
      %s828 = int_to_ptr.vmem [resolvable:$true] %s827
      %833 = dma.vmem_to_hbm [thread:$0]  %s828, 512, %s3, [#allocation4], 64, 64, 4
    $region25: #{tpu_custom_call.1} parent=1 // pred_fallthru
      _
    // Predicated region
    $region26: #{tpu_custom_call.1} parent=1 // pred_check
      _
    $region27: #{tpu_custom_call.1} parent=1 // pred_check_branch
      %835 = sbr.rel (0) target = $region29
    $region28: #{tpu_custom_call.1} parent=1 // pred_region
      %836 = dma.done [#allocation4], 512
    $region29: #{tpu_custom_call.1} parent=1 // pred_fallthru
      _
    %837 = vsyncpa [#allocation3], 1
    %838 = vsyncpa [#allocation6], 1
    %839 = vsyncpa [#allocation4], 1

</llo_original>
